<compile_context>
chip_gen: v6e
topology: v6e:2x2x1
jax: 0.10.0
libtpu: 0.0.40
codegen_flags: <defaults>
</compile_context>

<pallas_src>
import functools

import jax
import jax.numpy as jnp
from jax.experimental import pallas as pl
from jax.experimental.pallas import tpu as pltpu

EPS = 1e-5          # nn.InstanceNorm2d default eps
NEG_SLOPE = 1e-2    # nnU-Net default LeakyReLU negative_slope


def _round_up(x, m):
    return (x + m - 1) // m * m


def _dense_block_kernel(x_ref, w_ref, gb_ref, mask_ref, out_ref, *,
                        kh, kw, Wp, HWp, n_valid, matmul_dtype):
    # x_ref    : (1, Cin_p, Hp*Wp)      flattened zero-padded sample (matmul_dtype)
    # w_ref    : (kh*kw, Cout_p, Cin_p) per-tap conv weights (matmul_dtype)
    # gb_ref   : (Cout_p, 2)  f32       [:, 0] = gamma, [:, 1] = beta
    # mask_ref : (1, H*Wp)    f32       1.0 on valid (non-pad) output columns
    # out_ref  : (1, Cout_p, H*Wp) f32  LeakyReLU(InstanceNorm(conv)) on the padded-width grid
    x = x_ref[0].astype(jnp.float32)        # tiny; f32 keeps the unaligned lane slicing simple
    mask = mask_ref[...]                    # (1, HWp)

    # --- convolution: accumulate kh*kw tap matmuls on the MXU (lane axis = spatial) ---
    acc = None
    t = 0
    for u in range(kh):
        for v in range(kw):
            start = u * Wp + v
            s = x[:, start:start + HWp].astype(matmul_dtype)               # (Cin_p, HWp)
            d = jnp.dot(w_ref[t], s, preferred_element_type=jnp.float32)   # (Cout_p, HWp)
            acc = d if acc is None else acc + d
            t += 1
    # NOTE: conv bias is intentionally omitted -- InstanceNorm subtracts the per-(n, c)
    # spatial mean, which cancels any per-channel bias exactly.

    # --- instance norm: single pass, masked sum / sum-of-squares over valid columns ---
    masked = acc * mask
    s1 = jnp.sum(masked, axis=1, keepdims=True)            # (Cout_p, 1)
    s2 = jnp.sum(masked * acc, axis=1, keepdims=True)      # sum of conv^2 over valid cols
    inv_n = 1.0 / n_valid
    mean = s1 * inv_n
    var = s2 * inv_n - mean * mean                         # biased variance (matches PyTorch)
    inv_std = jax.lax.rsqrt(var + EPS)
    gamma = gb_ref[:, 0:1]                                  # (Cout_p, 1)
    beta = gb_ref[:, 1:2]
    scale = gamma * inv_std
    shift = beta - mean * scale
    y = acc * scale + shift                                 # single FMA over the big tensor

    # --- LeakyReLU ---
    out_ref[0] = jnp.where(y >= 0.0, y, NEG_SLOPE * y)


def basic_dense_block_forward(x_nchw, weight_oihw, bias, gamma, beta, *,
                              matmul_dtype=jnp.bfloat16):
    """Forward pass of BasicDenseBlock.

    x_nchw      : (N, Cin, H, W)
    weight_oihw : (Cout, Cin, kh, kw)  -- PyTorch Conv2d weight layout
    bias        : (Cout,)  accepted for API parity; mathematically cancelled by the
                  InstanceNorm mean subtraction, so it is never used.
    gamma, beta : (Cout,)  InstanceNorm2d affine parameters
    returns     : (N, Cout, H, W) float32
    """
    del bias  # exactly cancelled by the instance-norm mean subtraction
    N, Cin, H, W = x_nchw.shape
    Cout, Cin_w, kh, kw = weight_oihw.shape
    assert Cin_w == Cin, (Cin_w, Cin)
    ph, pw = (kh - 1) // 2, (kw - 1) // 2

    Cin_p = _round_up(Cin, 8)
    Cout_p = _round_up(Cout, 8)

    # Zero-pad spatially ('same' conv).  One extra bottom row keeps every in-kernel tap
    # slice (offset u*Wp + v, length H*Wp) inside the flattened padded image.
    extra = 1 if kw > 1 else 0
    Hp = H + 2 * ph + extra
    Wp = W + 2 * pw
    HWp = H * Wp

    xp = jnp.pad(x_nchw.astype(jnp.float32),
                 ((0, 0), (0, Cin_p - Cin), (ph, ph + extra), (pw, pw)))
    x_flat = xp.reshape(N, Cin_p, Hp * Wp).astype(matmul_dtype)

    # (Cout, Cin, kh, kw) -> (kh*kw, Cout_p, Cin_p), zero-padded channels.
    w_taps = jnp.transpose(weight_oihw.astype(jnp.float32), (2, 3, 0, 1))
    w_taps = w_taps.reshape(kh * kw, Cout, Cin)
    w_taps = jnp.pad(w_taps, ((0, 0), (0, Cout_p - Cout), (0, Cin_p - Cin)))
    w_taps = w_taps.astype(matmul_dtype)

    # gamma/beta combined into one tiny (Cout_p, 2) block (one DMA instead of three).
    gb = jnp.stack([gamma.astype(jnp.float32), beta.astype(jnp.float32)], axis=1)
    gb = jnp.pad(gb, ((0, Cout_p - Cout), (0, 0)))

    # Valid-column mask on the padded-width spatial grid.
    cols = jnp.arange(HWp, dtype=jnp.int32) % Wp
    mask = (cols < W).astype(jnp.float32)[None, :]           # (1, HWp)

    kernel = functools.partial(
        _dense_block_kernel, kh=kh, kw=kw, Wp=Wp, HWp=HWp,
        n_valid=float(H * W), matmul_dtype=matmul_dtype)

    # TODO(synk): for production nnU-Net image sizes, add an H-tile grid axis with a
    # two-phase (sum/sumsq accumulate, then normalize) instance-norm reduction so the
    # per-step blocks fit v7x's 64 MiB VMEM; at these small sizes a whole sample per
    # grid step is well inside the budget.
    out_flat = pl.pallas_call(
        kernel,
        out_shape=jax.ShapeDtypeStruct((N, Cout_p, HWp), jnp.float32),
        grid_spec=pltpu.PrefetchScalarGridSpec(
            num_scalar_prefetch=0,
            grid=(N,),
            in_specs=[
                pl.BlockSpec((1, Cin_p, Hp * Wp), lambda n: (n, 0, 0)),
                pl.BlockSpec((kh * kw, Cout_p, Cin_p), lambda n: (0, 0, 0)),
                pl.BlockSpec((Cout_p, 2), lambda n: (0, 0)),
                pl.BlockSpec((1, HWp), lambda n: (0, 0)),
            ],
            out_specs=pl.BlockSpec((1, Cout_p, HWp), lambda n: (n, 0, 0)),
        ),
        compiler_params=pltpu.CompilerParams(
            dimension_semantics=("parallel",),
            vmem_limit_bytes=48 * 1024 * 1024,
        ),
    )(x_flat, w_taps, gb, mask)

    # Output is already NCHW-flat on a padded-width grid: split the last dim and drop
    # the pad columns / pad channels.  No transpose needed.
    out = out_flat.reshape(N, Cout_p, H, Wp)[:, :Cout, :, :W]
    return out


if __name__ == "__main__":
    # Module config (small, consistent with the module's __init__):
    #   in_planes=4, growth_rate(=out_planes)=8, kernel_size=(3,3), stride=1,
    #   norm = InstanceNorm2d(affine=True), nonlin = LeakyReLU(1e-2), dropout p=0.
    N, Cin, H, W = 2, 4, 16, 16
    Cout, kh, kw = 8, 3, 3

    key = jax.random.PRNGKey(0)
    kx, kw_, kb, kg, kbe = jax.random.split(key, 5)

    x = jax.random.normal(kx, (N, Cin, H, W), dtype=jnp.float32)
    weight = 0.1 * jax.random.normal(kw_, (Cout, Cin, kh, kw), dtype=jnp.float32)  # OIHW
    bias = 0.05 * jax.random.normal(kb, (Cout,), dtype=jnp.float32)
    gamma = 1.0 + 0.1 * jax.random.normal(kg, (Cout,), dtype=jnp.float32)
    beta = 0.1 * jax.random.normal(kbe, (Cout,), dtype=jnp.float32)

    out = basic_dense_block_forward(x, weight, bias, gamma, beta)
    out = jax.block_until_ready(out)
    assert out.shape == (N, Cout, H, W), out.shape

    # Pure-JAX f32 reference: conv + bias + InstanceNorm(affine) + LeakyReLU.
    conv = jax.lax.conv_general_dilated(
        x, weight, window_strides=(1, 1), padding="SAME",
        dimension_numbers=("NCHW", "OIHW", "NCHW"))
    conv = conv + bias[None, :, None, None]
    mu = conv.mean(axis=(2, 3), keepdims=True)
    var = conv.var(axis=(2, 3), keepdims=True)
    ref = (conv - mu) * jax.lax.rsqrt(var + EPS)
    ref = ref * gamma[None, :, None, None] + beta[None, :, None, None]
    ref = jnp.where(ref >= 0, ref, NEG_SLOPE * ref)

    err = float(jnp.max(jnp.abs(out - ref)))
    assert err < 5e-2, f"max abs err {err}"
    print("KERNEL_OK")
</pallas_src>

<mosaic_0001>
module attributes {stable_mosaic.version = 11 : i64} {
  func.func @_dense_block_kernel(%arg0: i32, %arg1: memref<1x8x342xbf16, #tpu.memory_space<vmem>>, %arg2: memref<9x8x8xbf16, #tpu.memory_space<vmem>>, %arg3: memref<8x2xf32, #tpu.memory_space<vmem>>, %arg4: memref<1x288xf32, #tpu.memory_space<vmem>>, %arg5: memref<1x8x288xf32, #tpu.memory_space<vmem>>) attributes {dimension_semantics = [#tpu.dimension_semantics<parallel>], iteration_bounds = array<i64: 2>, scalar_prefetch = 0 : i64, scratch_operands = 0 : i64, tpu.core_type = #tpu.core_type<tc>, window_params = [{transform_indices = @transform_0, window_bounds = array<i64: 1, 8, 342>}, {pipeline_mode = #tpu.pipeline_mode<synchronous>, transform_indices = @transform_1, window_bounds = array<i64: 9, 8, 8>}, {pipeline_mode = #tpu.pipeline_mode<synchronous>, transform_indices = @transform_2, window_bounds = array<i64: 8, 2>}, {pipeline_mode = #tpu.pipeline_mode<synchronous>, transform_indices = @transform_3, window_bounds = array<i64: 1, 288>}, {transform_indices = @transform_4, window_bounds = array<i64: 1, 8, 288>}]} {
    %c0 = arith.constant 0 : index
    %c0_0 = arith.constant 0 : index
    %c0_1 = arith.constant 0 : index
    %0 = vector.load %arg1[%c0, %c0_0, %c0_1] : memref<1x8x342xbf16, #tpu.memory_space<vmem>>, vector<1x8x342xbf16>
    %1 = vector.shape_cast %0 : vector<1x8x342xbf16> to vector<8x342xbf16>
    %2 = arith.extf %1 : vector<8x342xbf16> to vector<8x342xf32>
    %c0_2 = arith.constant 0 : index
    %c0_3 = arith.constant 0 : index
    %3 = vector.load %arg4[%c0_2, %c0_3] : memref<1x288xf32, #tpu.memory_space<vmem>>, vector<1x288xf32>
    %4 = vector.extract_strided_slice %2 {offsets = [0, 0], sizes = [8, 288], strides = [1, 1]} : vector<8x342xf32> to vector<8x288xf32>
    %5 = arith.truncf %4 : vector<8x288xf32> to vector<8x288xbf16>
    %c0_4 = arith.constant 0 : index
    %c0_5 = arith.constant 0 : index
    %c0_6 = arith.constant 0 : index
    %6 = vector.load %arg2[%c0_4, %c0_5, %c0_6] : memref<9x8x8xbf16, #tpu.memory_space<vmem>>, vector<1x8x8xbf16>
    %7 = vector.shape_cast %6 : vector<1x8x8xbf16> to vector<8x8xbf16>
    %cst = arith.constant dense<0.000000e+00> : vector<8x288xf32>
    %8 = tpu.matmul %7, %5, %cst {dimension_numbers = #tpu.dot_dimension_numbers<[1], [0], [0], [1], [0, 0, 1, 1], [], []>} : vector<8x8xbf16>, vector<8x288xbf16>, vector<8x288xf32> -> vector<8x288xf32>
    %9 = vector.extract_strided_slice %2 {offsets = [0, 1], sizes = [8, 288], strides = [1, 1]} : vector<8x342xf32> to vector<8x288xf32>
    %10 = arith.truncf %9 : vector<8x288xf32> to vector<8x288xbf16>
    %c1 = arith.constant 1 : index
    %c0_7 = arith.constant 0 : index
    %c0_8 = arith.constant 0 : index
    %11 = vector.load %arg2[%c1, %c0_7, %c0_8] : memref<9x8x8xbf16, #tpu.memory_space<vmem>>, vector<1x8x8xbf16>
    %12 = vector.shape_cast %11 : vector<1x8x8xbf16> to vector<8x8xbf16>
    %cst_9 = arith.constant dense<0.000000e+00> : vector<8x288xf32>
    %13 = tpu.matmul %12, %10, %cst_9 {dimension_numbers = #tpu.dot_dimension_numbers<[1], [0], [0], [1], [0, 0, 1, 1], [], []>} : vector<8x8xbf16>, vector<8x288xbf16>, vector<8x288xf32> -> vector<8x288xf32>
    %14 = arith.addf %8, %13 : vector<8x288xf32>
    %15 = vector.extract_strided_slice %2 {offsets = [0, 2], sizes = [8, 288], strides = [1, 1]} : vector<8x342xf32> to vector<8x288xf32>
    %16 = arith.truncf %15 : vector<8x288xf32> to vector<8x288xbf16>
    %c2 = arith.constant 2 : index
    %c0_10 = arith.constant 0 : index
    %c0_11 = arith.constant 0 : index
    %17 = vector.load %arg2[%c2, %c0_10, %c0_11] : memref<9x8x8xbf16, #tpu.memory_space<vmem>>, vector<1x8x8xbf16>
    %18 = vector.shape_cast %17 : vector<1x8x8xbf16> to vector<8x8xbf16>
    %cst_12 = arith.constant dense<0.000000e+00> : vector<8x288xf32>
    %19 = tpu.matmul %18, %16, %cst_12 {dimension_numbers = #tpu.dot_dimension_numbers<[1], [0], [0], [1], [0, 0, 1, 1], [], []>} : vector<8x8xbf16>, vector<8x288xbf16>, vector<8x288xf32> -> vector<8x288xf32>
    %20 = arith.addf %14, %19 : vector<8x288xf32>
    %21 = vector.extract_strided_slice %2 {offsets = [0, 18], sizes = [8, 288], strides = [1, 1]} : vector<8x342xf32> to vector<8x288xf32>
    %22 = arith.truncf %21 : vector<8x288xf32> to vector<8x288xbf16>
    %c3 = arith.constant 3 : index
    %c0_13 = arith.constant 0 : index
    %c0_14 = arith.constant 0 : index
    %23 = vector.load %arg2[%c3, %c0_13, %c0_14] : memref<9x8x8xbf16, #tpu.memory_space<vmem>>, vector<1x8x8xbf16>
    %24 = vector.shape_cast %23 : vector<1x8x8xbf16> to vector<8x8xbf16>
    %cst_15 = arith.constant dense<0.000000e+00> : vector<8x288xf32>
    %25 = tpu.matmul %24, %22, %cst_15 {dimension_numbers = #tpu.dot_dimension_numbers<[1], [0], [0], [1], [0, 0, 1, 1], [], []>} : vector<8x8xbf16>, vector<8x288xbf16>, vector<8x288xf32> -> vector<8x288xf32>
    %26 = arith.addf %20, %25 : vector<8x288xf32>
    %27 = vector.extract_strided_slice %2 {offsets = [0, 19], sizes = [8, 288], strides = [1, 1]} : vector<8x342xf32> to vector<8x288xf32>
    %28 = arith.truncf %27 : vector<8x288xf32> to vector<8x288xbf16>
    %c4 = arith.constant 4 : index
    %c0_16 = arith.constant 0 : index
    %c0_17 = arith.constant 0 : index
    %29 = vector.load %arg2[%c4, %c0_16, %c0_17] : memref<9x8x8xbf16, #tpu.memory_space<vmem>>, vector<1x8x8xbf16>
    %30 = vector.shape_cast %29 : vector<1x8x8xbf16> to vector<8x8xbf16>
    %cst_18 = arith.constant dense<0.000000e+00> : vector<8x288xf32>
    %31 = tpu.matmul %30, %28, %cst_18 {dimension_numbers = #tpu.dot_dimension_numbers<[1], [0], [0], [1], [0, 0, 1, 1], [], []>} : vector<8x8xbf16>, vector<8x288xbf16>, vector<8x288xf32> -> vector<8x288xf32>
    %32 = arith.addf %26, %31 : vector<8x288xf32>
    %33 = vector.extract_strided_slice %2 {offsets = [0, 20], sizes = [8, 288], strides = [1, 1]} : vector<8x342xf32> to vector<8x288xf32>
    %34 = arith.truncf %33 : vector<8x288xf32> to vector<8x288xbf16>
    %c5 = arith.constant 5 : index
    %c0_19 = arith.constant 0 : index
    %c0_20 = arith.constant 0 : index
    %35 = vector.load %arg2[%c5, %c0_19, %c0_20] : memref<9x8x8xbf16, #tpu.memory_space<vmem>>, vector<1x8x8xbf16>
    %36 = vector.shape_cast %35 : vector<1x8x8xbf16> to vector<8x8xbf16>
    %cst_21 = arith.constant dense<0.000000e+00> : vector<8x288xf32>
    %37 = tpu.matmul %36, %34, %cst_21 {dimension_numbers = #tpu.dot_dimension_numbers<[1], [0], [0], [1], [0, 0, 1, 1], [], []>} : vector<8x8xbf16>, vector<8x288xbf16>, vector<8x288xf32> -> vector<8x288xf32>
    %38 = arith.addf %32, %37 : vector<8x288xf32>
    %39 = vector.extract_strided_slice %2 {offsets = [0, 36], sizes = [8, 288], strides = [1, 1]} : vector<8x342xf32> to vector<8x288xf32>
    %40 = arith.truncf %39 : vector<8x288xf32> to vector<8x288xbf16>
    %c6 = arith.constant 6 : index
    %c0_22 = arith.constant 0 : index
    %c0_23 = arith.constant 0 : index
    %41 = vector.load %arg2[%c6, %c0_22, %c0_23] : memref<9x8x8xbf16, #tpu.memory_space<vmem>>, vector<1x8x8xbf16>
    %42 = vector.shape_cast %41 : vector<1x8x8xbf16> to vector<8x8xbf16>
    %cst_24 = arith.constant dense<0.000000e+00> : vector<8x288xf32>
    %43 = tpu.matmul %42, %40, %cst_24 {dimension_numbers = #tpu.dot_dimension_numbers<[1], [0], [0], [1], [0, 0, 1, 1], [], []>} : vector<8x8xbf16>, vector<8x288xbf16>, vector<8x288xf32> -> vector<8x288xf32>
    %44 = arith.addf %38, %43 : vector<8x288xf32>
    %45 = vector.extract_strided_slice %2 {offsets = [0, 37], sizes = [8, 288], strides = [1, 1]} : vector<8x342xf32> to vector<8x288xf32>
    %46 = arith.truncf %45 : vector<8x288xf32> to vector<8x288xbf16>
    %c7 = arith.constant 7 : index
    %c0_25 = arith.constant 0 : index
    %c0_26 = arith.constant 0 : index
    %47 = vector.load %arg2[%c7, %c0_25, %c0_26] : memref<9x8x8xbf16, #tpu.memory_space<vmem>>, vector<1x8x8xbf16>
    %48 = vector.shape_cast %47 : vector<1x8x8xbf16> to vector<8x8xbf16>
    %cst_27 = arith.constant dense<0.000000e+00> : vector<8x288xf32>
    %49 = tpu.matmul %48, %46, %cst_27 {dimension_numbers = #tpu.dot_dimension_numbers<[1], [0], [0], [1], [0, 0, 1, 1], [], []>} : vector<8x8xbf16>, vector<8x288xbf16>, vector<8x288xf32> -> vector<8x288xf32>
    %50 = arith.addf %44, %49 : vector<8x288xf32>
    %51 = vector.extract_strided_slice %2 {offsets = [0, 38], sizes = [8, 288], strides = [1, 1]} : vector<8x342xf32> to vector<8x288xf32>
    %52 = arith.truncf %51 : vector<8x288xf32> to vector<8x288xbf16>
    %c8 = arith.constant 8 : index
    %c0_28 = arith.constant 0 : index
    %c0_29 = arith.constant 0 : index
    %53 = vector.load %arg2[%c8, %c0_28, %c0_29] : memref<9x8x8xbf16, #tpu.memory_space<vmem>>, vector<1x8x8xbf16>
    %54 = vector.shape_cast %53 : vector<1x8x8xbf16> to vector<8x8xbf16>
    %cst_30 = arith.constant dense<0.000000e+00> : vector<8x288xf32>
    %55 = tpu.matmul %54, %52, %cst_30 {dimension_numbers = #tpu.dot_dimension_numbers<[1], [0], [0], [1], [0, 0, 1, 1], [], []>} : vector<8x8xbf16>, vector<8x288xbf16>, vector<8x288xf32> -> vector<8x288xf32>
    %56 = arith.addf %50, %55 : vector<8x288xf32>
    %57 = vector.broadcast %3 : vector<1x288xf32> to vector<8x288xf32>
    %58 = arith.mulf %56, %57 : vector<8x288xf32>
    %cst_31 = arith.constant dense<0.000000e+00> : vector<8xf32>
    %59 = vector.multi_reduction <add>, %58, %cst_31 [1] : vector<8x288xf32> to vector<8xf32>
    %60 = vector.shape_cast %59 : vector<8xf32> to vector<8x1xf32>
    %61 = arith.mulf %58, %56 : vector<8x288xf32>
    %cst_32 = arith.constant dense<0.000000e+00> : vector<8xf32>
    %62 = vector.multi_reduction <add>, %61, %cst_32 [1] : vector<8x288xf32> to vector<8xf32>
    %63 = vector.shape_cast %62 : vector<8xf32> to vector<8x1xf32>
    %cst_33 = arith.constant 3.906250e-03 : f32
    %64 = vector.broadcast %cst_33 : f32 to vector<8x1xf32>
    %65 = arith.mulf %60, %64 : vector<8x1xf32>
    %cst_34 = arith.constant 3.906250e-03 : f32
    %66 = vector.broadcast %cst_34 : f32 to vector<8x1xf32>
    %67 = arith.mulf %63, %66 : vector<8x1xf32>
    %68 = arith.mulf %65, %65 : vector<8x1xf32>
    %69 = arith.subf %67, %68 : vector<8x1xf32>
    %cst_35 = arith.constant 9.99999974E-6 : f32
    %70 = vector.broadcast %cst_35 : f32 to vector<8x1xf32>
    %71 = arith.addf %69, %70 : vector<8x1xf32>
    %72 = math.rsqrt %71 : vector<8x1xf32>
    %c0_36 = arith.constant 0 : index
    %c0_37 = arith.constant 0 : index
    %73 = vector.load %arg3[%c0_36, %c0_37] : memref<8x2xf32, #tpu.memory_space<vmem>>, vector<8x1xf32>
    %c0_38 = arith.constant 0 : index
    %c1_39 = arith.constant 1 : index
    %74 = vector.load %arg3[%c0_38, %c1_39] : memref<8x2xf32, #tpu.memory_space<vmem>>, vector<8x1xf32>
    %75 = arith.mulf %73, %72 : vector<8x1xf32>
    %76 = arith.mulf %65, %75 : vector<8x1xf32>
    %77 = arith.subf %74, %76 : vector<8x1xf32>
    %78 = vector.broadcast %75 : vector<8x1xf32> to vector<8x288xf32>
    %79 = arith.mulf %56, %78 : vector<8x288xf32>
    %80 = vector.broadcast %77 : vector<8x1xf32> to vector<8x288xf32>
    %81 = arith.addf %79, %80 : vector<8x288xf32>
    %cst_40 = arith.constant 0.000000e+00 : f32
    %82 = vector.broadcast %cst_40 : f32 to vector<8x288xf32>
    %83 = arith.cmpf oge, %81, %82 : vector<8x288xf32>
    %cst_41 = arith.constant 0.00999999977 : f32
    %84 = vector.broadcast %cst_41 : f32 to vector<8x288xf32>
    %85 = arith.mulf %84, %81 : vector<8x288xf32>
    %86 = arith.select %83, %81, %85 : vector<8x288xi1>, vector<8x288xf32>
    %c0_42 = arith.constant 0 : index
    %c0_43 = arith.constant 0 : index
    %c0_44 = arith.constant 0 : index
    %87 = vector.load %arg5[%c0_42, %c0_43, %c0_44] : memref<1x8x288xf32, #tpu.memory_space<vmem>>, vector<1x8x288xf32>
    %88 = vector.shape_cast %87 : vector<1x8x288xf32> to vector<8x288xf32>
    %89 = vector.shape_cast %86 : vector<8x288xf32> to vector<1x8x288xf32>
    tpu.vector_store %arg5[%c0_42, %c0_43, %c0_44], %89 {strides = array<i32>} : memref<1x8x288xf32, #tpu.memory_space<vmem>>, vector<1x8x288xf32>,
    return
  }
  func.func @transform_0(%arg0: i32) -> (i32, i32, i32) {
    %c0_i32 = arith.constant 0 : i32
    %c0_i32_0 = arith.constant 0 : i32
    %c0_i32_1 = arith.constant 0 : i32
    return %arg0, %c0_i32, %c0_i32_0 : i32, i32, i32
  }
  func.func @transform_1(%arg0: i32) -> (i32, i32, i32) {
    %c0_i32 = arith.constant 0 : i32
    %c0_i32_0 = arith.constant 0 : i32
    %c0_i32_1 = arith.constant 0 : i32
    %c0_i32_2 = arith.constant 0 : i32
    return %c0_i32, %c0_i32_0, %c0_i32_1 : i32, i32, i32
  }
  func.func @transform_2(%arg0: i32) -> (i32, i32) {
    %c0_i32 = arith.constant 0 : i32
    %c0_i32_0 = arith.constant 0 : i32
    %c0_i32_1 = arith.constant 0 : i32
    return %c0_i32, %c0_i32_0 : i32, i32
  }
  func.func @transform_3(%arg0: i32) -> (i32, i32) {
    %c0_i32 = arith.constant 0 : i32
    %c0_i32_0 = arith.constant 0 : i32
    %c0_i32_1 = arith.constant 0 : i32
    return %c0_i32, %c0_i32_0 : i32, i32
  }
  func.func @transform_4(%arg0: i32) -> (i32, i32, i32) {
    %c0_i32 = arith.constant 0 : i32
    %c0_i32_0 = arith.constant 0 : i32
    %c0_i32_1 = arith.constant 0 : i32
    return %arg0, %c0_i32, %c0_i32_0 : i32, i32, i32
  }
}

</mosaic_0001>

<llo_original>
// kernel: tpu_custom_call.1
$region0: #{tpu_custom_call.1}
  #allocation0 [shape = 'u32[]', space=smem, size = 0x4, offset = 0x4, fixed_abs, tag = 'smem constant byte address 0x4 - core index']
  #allocation1 [shape = 'u32[144,128]{1,0:T(1,128)}', space=vmem, size = 0x12000, scoped, tag = 'internal scratch']
  %s0 = inlined_call_operand.vmem [shape: bf16[2,8,342], index: 0, kind: input, shape index: {}]
  %s1 = inlined_call_operand.vmem [shape: bf16[9,8,8], index: 1, kind: input, shape index: {}]
  %s2 = inlined_call_operand.vmem [shape: f32[8,2], index: 2, kind: input, shape index: {}]
  %s3 = inlined_call_operand.vmem [shape: f32[1,288], index: 3, kind: input, shape index: {}]
  %s4 = inlined_call_operand.hbm [shape: f32[2,8,288], index: 4, kind: output, shape index: {}]
  %s5 = sld [smem:[#allocation0]]
  $region49: #{tpu_custom_call.1} parent=0
    _
  %s7 = ssub.s32 1, %s5
  %s8 = scalar_select 0, %s7, %s5
  $region1: #{tpu_custom_call.1} parent=0
    #allocation2 [shape = 'u8[24576]{0}', space=vmem, size = 0x6000, scoped, tag = 'output window, operand 0']
    #allocation3 [shape = 's32[2]{0}', space=sflag, size = 0x8, scoped, tag = 'scoped memory for tpu_custom_call.1']
    %9 = vsyncpa [#allocation3], 0
    %s10 = scalar_lea.sflag [#allocation3], 1
    %11 = vsyncpa %s10, 0
    loop: start=0, step=1, limit=4
    $region2: #{tpu_custom_call.1} parent=1 // loop_pre_header
      _
    $region3: #{tpu_custom_call.1} parent=1 // loop_header
      %s13 = sphi 0, %s17
      %p14 = scmp.ge.s32.totalorder %s13, 4
      %s23 = sphi 0, %s25
      %s26 = sphi 0, %s23
      %s27 = sphi 0, %s26
      %s43 = sphi 0, %s27
      %s47 = sphi 0, %s47
      %s49 = sphi 0, %s47
      %s50 = sphi 0, %s49
      %s64 = sphi 0, %s50
      %s68 = sphi 0, %s68
      %s70 = sphi 0, %s68
      %s71 = sphi 0, %s70
      %s85 = sphi 0, %s71
      %s89 = sphi 0, %s89
      %s91 = sphi 0, %s89
      %s92 = sphi 0, %s91
      %s106 = sphi 0, %s92
      %s112 = sphi 0, %s114
      %s115 = sphi 0, %s112
      %s116 = sphi 0, %s115
      %s132 = sphi 0, %s116
    $region4: #{tpu_custom_call.1} parent=1 // loop_header_branch
      %16 = sbr.rel (%p14) target = $region8
    $region5: #{tpu_custom_call.1} parent=1 // loop_body
      %s18 = ssub.s32 %s13, 1
      %s19 = ssub.s32 %s13, 2
      %s20 = sadd.s32 %s13, 1
      %s21 = ssub.s32 %s13, %s20
      %p22 = scmp.eq.s32.totalorder %s21, 0
      %s24 = sadd.s32 %s23, 1
      %s25 = scalar_select %p22, %s23, %s24
      %p28 = pneg %p22
      %p29 = scmp.eq.s32.totalorder %s13, 1
      %p30 = por %p28, %p29
      %p31 = scmp.ne.s32.totalorder %s23, %s26
      %p32 = scmp.eq.s32.totalorder %s13, 0
      %p33 = por %p31, %p32
      %p34 = scmp.ne.s32.totalorder %s23, %s26
      %p35 = scmp.eq.s32.totalorder %s18, 1
      %p36 = por %p34, %p35
      %p37 = scmp.ne.s32.totalorder %s26, %s27
      %p38 = scmp.eq.s32.totalorder %s18, 0
      %p39 = por %p37, %p38
      %p40 = scmp.ne.s32.totalorder %s26, %s27
      %p41 = scmp.eq.s32.totalorder %s19, 1
      %p42 = por %p40, %p41
      %p44 = scmp.ne.s32.totalorder %s27, %s43
      %p45 = scmp.eq.s32.totalorder %s19, 0
      %p46 = por %p44, %p45
      %s48 = sadd.s32 %s47, 1
      %p51 = scmp.eq.s32.totalorder %s13, 1
      %p52 = scmp.ne.s32.totalorder %s47, %s49
      %p53 = scmp.eq.s32.totalorder %s13, 0
      %p54 = por %p52, %p53
      %p55 = scmp.ne.s32.totalorder %s47, %s49
      %p56 = scmp.eq.s32.totalorder %s18, 1
      %p57 = por %p55, %p56
      %p58 = scmp.ne.s32.totalorder %s49, %s50
      %p59 = scmp.eq.s32.totalorder %s18, 0
      %p60 = por %p58, %p59
      %p61 = scmp.ne.s32.totalorder %s49, %s50
      %p62 = scmp.eq.s32.totalorder %s19, 1
      %p63 = por %p61, %p62
      %p65 = scmp.ne.s32.totalorder %s50, %s64
      %p66 = scmp.eq.s32.totalorder %s19, 0
      %p67 = por %p65, %p66
      %s69 = sadd.s32 %s68, 1
      %p72 = scmp.eq.s32.totalorder %s13, 1
      %p73 = scmp.ne.s32.totalorder %s68, %s70
      %p74 = scmp.eq.s32.totalorder %s13, 0
      %p75 = por %p73, %p74
      %p76 = scmp.ne.s32.totalorder %s68, %s70
      %p77 = scmp.eq.s32.totalorder %s18, 1
      %p78 = por %p76, %p77
      %p79 = scmp.ne.s32.totalorder %s70, %s71
      %p80 = scmp.eq.s32.totalorder %s18, 0
      %p81 = por %p79, %p80
      %p82 = scmp.ne.s32.totalorder %s70, %s71
      %p83 = scmp.eq.s32.totalorder %s19, 1
      %p84 = por %p82, %p83
      %p86 = scmp.ne.s32.totalorder %s71, %s85
      %p87 = scmp.eq.s32.totalorder %s19, 0
      %p88 = por %p86, %p87
      %s90 = sadd.s32 %s89, 1
      %p93 = scmp.eq.s32.totalorder %s13, 1
      %p94 = scmp.ne.s32.totalorder %s89, %s91
      %p95 = scmp.eq.s32.totalorder %s13, 0
      %p96 = por %p94, %p95
      %p97 = scmp.ne.s32.totalorder %s89, %s91
      %p98 = scmp.eq.s32.totalorder %s18, 1
      %p99 = por %p97, %p98
      %p100 = scmp.ne.s32.totalorder %s91, %s92
      %p101 = scmp.eq.s32.totalorder %s18, 0
      %p102 = por %p100, %p101
      %p103 = scmp.ne.s32.totalorder %s91, %s92
      %p104 = scmp.eq.s32.totalorder %s19, 1
      %p105 = por %p103, %p104
      %p107 = scmp.ne.s32.totalorder %s92, %s106
      %p108 = scmp.eq.s32.totalorder %s19, 0
      %p109 = por %p107, %p108
      %s110 = ssub.s32 %s13, %s20
      %p111 = scmp.eq.s32.totalorder %s110, 0
      %s113 = sadd.s32 %s112, 1
      %s114 = scalar_select %p111, %s112, %s113
      %p117 = pneg %p111
      %p118 = scmp.eq.s32.totalorder %s13, 1
      %p119 = por %p117, %p118
      %p120 = scmp.ne.s32.totalorder %s112, %s115
      %p121 = scmp.eq.s32.totalorder %s13, 0
      %p122 = por %p120, %p121
      %p123 = scmp.ne.s32.totalorder %s112, %s115
      %p124 = scmp.eq.s32.totalorder %s18, 1
      %p125 = por %p123, %p124
      %p126 = scmp.ne.s32.totalorder %s115, %s116
      %p127 = scmp.eq.s32.totalorder %s18, 0
      %p128 = por %p126, %p127
      %p129 = scmp.ne.s32.totalorder %s115, %s116
      %p130 = scmp.eq.s32.totalorder %s19, 1
      %p131 = por %p129, %p130
      %p133 = scmp.ne.s32.totalorder %s116, %s132
      %p134 = scmp.eq.s32.totalorder %s19, 0
      %p135 = por %p133, %p134
      %p136 = scmp.le.s32.totalorder 1, %s13
      %p137 = scmp.lt.s32.totalorder %s13, 3
      %p138 = pnand %p136, %p137
      %p139 = pneg %p138
      // Predicated region
      $region9: #{tpu_custom_call.1} parent=5 // pred_check
        _
      $region10: #{tpu_custom_call.1} parent=5 // pred_check_branch
        %141 = sbr.rel (%p138) target = $region12
      $region11: #{tpu_custom_call.1} parent=5 // pred_region
        %s142 = ssub.s32 %s13, 1
        // Predicated region
        $region13: #{tpu_custom_call.1} parent=11 // pred_check
          %p143 = pneg %p60
        $region14: #{tpu_custom_call.1} parent=11 // pred_check_branch
          %145 = sbr.rel (%p143) target = $region16
        $region15: #{tpu_custom_call.1} parent=11 // pred_region
          _
        $region16: #{tpu_custom_call.1} parent=11 // pred_fallthru
          _
        // Predicated region
        $region17: #{tpu_custom_call.1} parent=11 // pred_check
          %p146 = pneg %p81
        $region18: #{tpu_custom_call.1} parent=11 // pred_check_branch
          %148 = sbr.rel (%p146) target = $region20
        $region19: #{tpu_custom_call.1} parent=11 // pred_region
          _
        $region20: #{tpu_custom_call.1} parent=11 // pred_fallthru
          _
        // Predicated region
        $region21: #{tpu_custom_call.1} parent=11 // pred_check
          %p149 = pneg %p102
        $region22: #{tpu_custom_call.1} parent=11 // pred_check_branch
          %151 = sbr.rel (%p149) target = $region24
        $region23: #{tpu_custom_call.1} parent=11 // pred_region
          _
        $region24: #{tpu_custom_call.1} parent=11 // pred_fallthru
          _
      $region12: #{tpu_custom_call.1} parent=5 // pred_fallthru
        _
      %p152 = scmp.lt.s32.totalorder %s13, 2
      // Predicated region
      $region25: #{tpu_custom_call.1} parent=5 // pred_check
        %p153 = pneg %p152
      $region26: #{tpu_custom_call.1} parent=5 // pred_check_branch
        %155 = sbr.rel (%p153) target = $region28
      $region27: #{tpu_custom_call.1} parent=5 // pred_region
        // Predicated region
        $region29: #{tpu_custom_call.1} parent=27 // pred_check
          %p156 = pneg %p33
        $region30: #{tpu_custom_call.1} parent=27 // pred_check_branch
          %158 = sbr.rel (%p156) target = $region32
        $region31: #{tpu_custom_call.1} parent=27 // pred_region
          %p159 = scmp.lt.s32.totalorder %s13, 1
          %s160 = scalar_select %p159, %s13, 1
          %s161 = smul.addr %s160, 3
          %s162 = smul.addr %s161, 4
          %s163 = scalar_lea.vmem %s0, %s162
        $region32: #{tpu_custom_call.1} parent=27 // pred_fallthru
          _
      $region28: #{tpu_custom_call.1} parent=5 // pred_fallthru
        _
      %p164 = scmp.le.s32.totalorder 1, %s13
      %p165 = scmp.lt.s32.totalorder %s13, 3
      %p166 = pnand %p164, %p165
      %p167 = pneg %p166
      // Predicated region
      $region33: #{tpu_custom_call.1} parent=5 // pred_check
        _
      $region34: #{tpu_custom_call.1} parent=5 // pred_check_branch
        %169 = sbr.rel (%p166) target = $region36
      $region35: #{tpu_custom_call.1} parent=5 // pred_region
        %s170 = ssub.s32 %s13, 1
        %p171 = scmp.lt.s32.totalorder %s18, 1
        %s172 = scalar_select %p171, %s18, 1
        %s173 = smul.addr %s172, 3
        %s174 = smul.addr %s173, 4
        %s175 = scalar_lea.vmem %s0, %s174
        %p176 = pneg %p39
        %p177 = pneg %p36
        %p178 = pneg %p60
        %p179 = pneg %p57
        %p180 = pneg %p81
        %p181 = pneg %p78
        %p182 = pneg %p102
        %p183 = pneg %p99
        %p184 = pneg %p128
        %p185 = pneg %p125
        %s186 = sand.u32 %s115, 1
        %s187 = scalar_lea.sflag [#allocation3], %s186
        %s188 = sand.u32 %s115, 1
        %s189 = smul.addr %s188, 24
        %s190 = scalar_lea.vmem [#allocation2], %s189
        %p191 = scmp.lt.s32.totalorder %s18, 1
        %s192 = scalar_select %p191, %s18, 1
        %s193 = smul.addr %s192, 3
        %s194 = smul.addr %s193, 4
        %s195 = scalar_lea.vmem %s0, %s194
        %v197 = vld [vmem:[%s195] sm:$0xff]
        %v198 = vld [vmem:[%s195 + $0x8] sm:$0xf]
        %v199 = vunpack.c.l.bf16 %v197
        %v200 = vunpack.c.h.bf16 %v197
        %v201 = vunpack.c.l.bf16 %v198
        %v202 = vld [vmem:[%s3] sm:$0x7]
        %v203 = vpack.c.bf16 %v199, %v199
        %v204 = vpack.c.bf16 %v200, %v200
        %v205 = vpack.c.bf16 %v201, %v201
        %v206 = vld [vmem:[%s1] sm:$0xf]
        %s207 = scalar_lea.vmem %s1, 4
        %v208 = vld [vmem:[%s207] sm:$0xf]
        %212 = vrot.lane.b32.xlu0 %v203, 127
        %v213 = vpop.permute.xlu0 %212
        %214 = vrot.lane.b32.xlu0 %v204, 127
        %v215 = vpop.permute.xlu0 %214
        %216 = vrot.lane.b32.xlu0 %v205, 127
        %v217 = vpop.permute.xlu0 %216
        %vm218 = vcmask 1039360
        %v219 = vsel %vm218, %v213, %v215
        %v220 = vsel %vm218, %v215, %v217
        %vm221 = vcmask 64512
        %v223 = vsel %vm221, %v208, 0
        %vm225 = vcmask 1043456
        %v227 = vsel %vm225, %v219, 0
        %v230 = vsel %vm225, %v220, 0
        %v233 = vsel %vm225, %v217, 0
        %235 = vmatprep.subr.bf16.mxu0 0
        %236 = vmatpush1.bf16.msra.mxu0 0
        %237 = vmatprep.subr.bf16.mxu0 0
        %238 = vmatpush1.bf16.msra.mxu0 0
        %239 = vmatprep.subr.bf16.mxu0 0
        %240 = vmatpush1.bf16.msra.mxu0 0
        %241 = vmatprep.subr.bf16.mxu0 0
        %242 = vmatpush1.bf16.msra.mxu0 0
        %243 = vmatprep.subr.bf16.mxu0 0
        %244 = vmatpush1.bf16.msra.mxu0 0
        %245 = vmatprep.subr.bf16.mxu0 0
        %246 = vmatpush1.bf16.msra.mxu0 0
        %247 = vmatprep.subr.bf16.mxu0 0
        %248 = vmatpush1.bf16.msra.mxu0 0
        %249 = vmatprep.subr.bf16.mxu0 %v230
        %250 = vmatpush1.bf16.msra.mxu0 %v227
        %251 = vmatprep.subr.bf16.mxu0 0
        %252 = vmatpush2.bf16.msra.mxu0 0
        %253 = vmatprep.subr.bf16.mxu0 0
        %254 = vmatpush2.bf16.msra.mxu0 0
        %255 = vmatprep.subr.bf16.mxu0 0
        %256 = vmatpush2.bf16.msra.mxu0 0
        %257 = vmatprep.subr.bf16.mxu0 0
        %258 = vmatpush2.bf16.msra.mxu0 0
        %259 = vmatprep.subr.bf16.mxu0 0
        %260 = vmatpush2.bf16.msra.mxu0 0
        %261 = vmatprep.subr.bf16.mxu0 0
        %262 = vmatpush2.bf16.msra.mxu0 0
        %263 = vmatprep.subr.bf16.mxu0 0
        %264 = vmatpush2.bf16.msra.mxu0 0
        %265 = vmatprep.subr.bf16.mxu0 0
        %266 = vmatpush2.bf16.msra.mxu0 0
        %267 = vmatprep.mubr.bf16.mxu0 0
        %268 = vmatmul.mubr.bf16.gmra.mxu0 %v223
        %v269 = vpop.f32.mrf.mxu0
        %v270 = vadd.f32 0.0, %v269
        %v271 = vpop.f32.mrf.mxu0
        %v272 = vadd.f32 0.0, %v271
        %v273 = vpop.f32.mrf.mxu0
        %v274 = vpop.f32.mrf.mxu0
        %275 = vdwg.mxu0
        %276 = vmatprep.subr.bf16.mxu0 0
        %277 = vmatpush1.bf16.msra.mxu0 0
        %278 = vmatprep.subr.bf16.mxu0 0
        %279 = vmatpush1.bf16.msra.mxu0 0
        %280 = vmatprep.subr.bf16.mxu0 0
        %281 = vmatpush1.bf16.msra.mxu0 0
        %282 = vmatprep.subr.bf16.mxu0 0
        %283 = vmatpush1.bf16.msra.mxu0 0
        %284 = vmatprep.subr.bf16.mxu0 0
        %285 = vmatpush1.bf16.msra.mxu0 0
        %286 = vmatprep.subr.bf16.mxu0 0
        %287 = vmatpush1.bf16.msra.mxu0 0
        %288 = vmatprep.subr.bf16.mxu0 0
        %289 = vmatpush1.bf16.msra.mxu0 0
        %290 = vmatprep.subr.bf16.mxu0 0
        %291 = vmatpush1.bf16.msra.mxu0 %v233
        %292 = vmatprep.subr.bf16.mxu0 0
        %293 = vmatpush2.bf16.msra.mxu0 0
        %294 = vmatprep.subr.bf16.mxu0 0
        %295 = vmatpush2.bf16.msra.mxu0 0
        %296 = vmatprep.subr.bf16.mxu0 0
        %297 = vmatpush2.bf16.msra.mxu0 0
        %298 = vmatprep.subr.bf16.mxu0 0
        %299 = vmatpush2.bf16.msra.mxu0 0
        %300 = vmatprep.subr.bf16.mxu0 0
        %301 = vmatpush2.bf16.msra.mxu0 0
        %302 = vmatprep.subr.bf16.mxu0 0
        %303 = vmatpush2.bf16.msra.mxu0 0
        %304 = vmatprep.subr.bf16.mxu0 0
        %305 = vmatpush2.bf16.msra.mxu0 0
        %306 = vmatprep.subr.bf16.mxu0 0
        %307 = vmatpush2.bf16.msra.mxu0 0
        %308 = vmatprep.mubr.bf16.mxu0 0
        %309 = vmatmul.mubr.bf16.gmra.mxu0 %v223
        %v310 = vpop.f32.mrf.mxu0
        %v311 = vadd.f32 0.0, %v310
        %v312 = vpop.f32.mrf.mxu0
        %v313 = vpop.f32.mrf.mxu0
        %v314 = vpop.f32.mrf.mxu0
        %315 = vdwg.mxu0
        %v317 = vsel %vm221, %v206, 0
        %v320 = vsel %vm225, %v203, 0
        %v323 = vsel %vm225, %v204, 0
        %v326 = vsel %vm225, %v205, 0
        %328 = vmatprep.subr.bf16.mxu0 0
        %329 = vmatpush1.bf16.msra.mxu0 0
        %330 = vmatprep.subr.bf16.mxu0 0
        %331 = vmatpush1.bf16.msra.mxu0 0
        %332 = vmatprep.subr.bf16.mxu0 0
        %333 = vmatpush1.bf16.msra.mxu0 0
        %334 = vmatprep.subr.bf16.mxu0 0
        %335 = vmatpush1.bf16.msra.mxu0 0
        %336 = vmatprep.subr.bf16.mxu0 0
        %337 = vmatpush1.bf16.msra.mxu0 0
        %338 = vmatprep.subr.bf16.mxu0 0
        %339 = vmatpush1.bf16.msra.mxu0 0
        %340 = vmatprep.subr.bf16.mxu0 0
        %341 = vmatpush1.bf16.msra.mxu0 0
        %342 = vmatprep.subr.bf16.mxu0 %v323
        %343 = vmatpush1.bf16.msra.mxu0 %v320
        %344 = vmatprep.subr.bf16.mxu0 0
        %345 = vmatpush2.bf16.msra.mxu0 0
        %346 = vmatprep.subr.bf16.mxu0 0
        %347 = vmatpush2.bf16.msra.mxu0 0
        %348 = vmatprep.subr.bf16.mxu0 0
        %349 = vmatpush2.bf16.msra.mxu0 0
        %350 = vmatprep.subr.bf16.mxu0 0
        %351 = vmatpush2.bf16.msra.mxu0 0
        %352 = vmatprep.subr.bf16.mxu0 0
        %353 = vmatpush2.bf16.msra.mxu0 0
        %354 = vmatprep.subr.bf16.mxu0 0
        %355 = vmatpush2.bf16.msra.mxu0 0
        %356 = vmatprep.subr.bf16.mxu0 0
        %357 = vmatpush2.bf16.msra.mxu0 0
        %358 = vmatprep.subr.bf16.mxu0 0
        %359 = vmatpush2.bf16.msra.mxu0 0
        %360 = vmatprep.mubr.bf16.mxu0 0
        %361 = vmatmul.mubr.bf16.gmra.mxu0 %v317
        %v362 = vpop.f32.mrf.mxu0
        %v363 = vadd.f32 %v270, %v362
        %v364 = vpop.f32.mrf.mxu0
        %v365 = vadd.f32 %v272, %v364
        %v366 = vpop.f32.mrf.mxu0
        %v367 = vpop.f32.mrf.mxu0
        %368 = vdwg.mxu0
        %369 = vmatprep.subr.bf16.mxu0 0
        %370 = vmatpush1.bf16.msra.mxu0 0
        %371 = vmatprep.subr.bf16.mxu0 0
        %372 = vmatpush1.bf16.msra.mxu0 0
        %373 = vmatprep.subr.bf16.mxu0 0
        %374 = vmatpush1.bf16.msra.mxu0 0
        %375 = vmatprep.subr.bf16.mxu0 0
        %376 = vmatpush1.bf16.msra.mxu0 0
        %377 = vmatprep.subr.bf16.mxu0 0
        %378 = vmatpush1.bf16.msra.mxu0 0
        %379 = vmatprep.subr.bf16.mxu0 0
        %380 = vmatpush1.bf16.msra.mxu0 0
        %381 = vmatprep.subr.bf16.mxu0 0
        %382 = vmatpush1.bf16.msra.mxu0 0
        %383 = vmatprep.subr.bf16.mxu0 0
        %384 = vmatpush1.bf16.msra.mxu0 %v326
        %385 = vmatprep.subr.bf16.mxu0 0
        %386 = vmatpush2.bf16.msra.mxu0 0
        %387 = vmatprep.subr.bf16.mxu0 0
        %388 = vmatpush2.bf16.msra.mxu0 0
        %389 = vmatprep.subr.bf16.mxu0 0
        %390 = vmatpush2.bf16.msra.mxu0 0
        %391 = vmatprep.subr.bf16.mxu0 0
        %392 = vmatpush2.bf16.msra.mxu0 0
        %393 = vmatprep.subr.bf16.mxu0 0
        %394 = vmatpush2.bf16.msra.mxu0 0
        %395 = vmatprep.subr.bf16.mxu0 0
        %396 = vmatpush2.bf16.msra.mxu0 0
        %397 = vmatprep.subr.bf16.mxu0 0
        %398 = vmatpush2.bf16.msra.mxu0 0
        %399 = vmatprep.subr.bf16.mxu0 0
        %400 = vmatpush2.bf16.msra.mxu0 0
        %401 = vmatprep.mubr.bf16.mxu0 0
        %402 = vmatmul.mubr.bf16.gmra.mxu0 %v317
        %v403 = vpop.f32.mrf.mxu0
        %v404 = vadd.f32 %v311, %v403
        %v405 = vpop.f32.mrf.mxu0
        %v406 = vpop.f32.mrf.mxu0
        %v407 = vpop.f32.mrf.mxu0
        %408 = vdwg.mxu0
        %s409 = scalar_lea.vmem %s1, 8
        %v410 = vld [vmem:[%s409] sm:$0xf]
        %411 = vrot.lane.b32.xlu0 %v203, 126
        %v412 = vpop.permute.xlu0 %411
        %413 = vrot.lane.b32.xlu0 %v204, 126
        %v414 = vpop.permute.xlu0 %413
        %415 = vrot.lane.b32.xlu0 %v205, 126
        %v416 = vpop.permute.xlu0 %415
        %vm417 = vcmask 1031168
        %v418 = vsel %vm417, %v412, %v414
        %v419 = vsel %vm417, %v414, %v416
        %v421 = vsel %vm221, %v410, 0
        %v424 = vsel %vm225, %v418, 0
        %v427 = vsel %vm225, %v419, 0
        %v430 = vsel %vm225, %v416, 0
        %432 = vmatprep.subr.bf16.mxu0 0
        %433 = vmatpush1.bf16.msra.mxu0 0
        %434 = vmatprep.subr.bf16.mxu0 0
        %435 = vmatpush1.bf16.msra.mxu0 0
        %436 = vmatprep.subr.bf16.mxu0 0
        %437 = vmatpush1.bf16.msra.mxu0 0
        %438 = vmatprep.subr.bf16.mxu0 0
        %439 = vmatpush1.bf16.msra.mxu0 0
        %440 = vmatprep.subr.bf16.mxu0 0
        %441 = vmatpush1.bf16.msra.mxu0 0
        %442 = vmatprep.subr.bf16.mxu0 0
        %443 = vmatpush1.bf16.msra.mxu0 0
        %444 = vmatprep.subr.bf16.mxu0 0
        %445 = vmatpush1.bf16.msra.mxu0 0
        %446 = vmatprep.subr.bf16.mxu0 %v427
        %447 = vmatpush1.bf16.msra.mxu0 %v424
        %448 = vmatprep.subr.bf16.mxu0 0
        %449 = vmatpush2.bf16.msra.mxu0 0
        %450 = vmatprep.subr.bf16.mxu0 0
        %451 = vmatpush2.bf16.msra.mxu0 0
        %452 = vmatprep.subr.bf16.mxu0 0
        %453 = vmatpush2.bf16.msra.mxu0 0
        %454 = vmatprep.subr.bf16.mxu0 0
        %455 = vmatpush2.bf16.msra.mxu0 0
        %456 = vmatprep.subr.bf16.mxu0 0
        %457 = vmatpush2.bf16.msra.mxu0 0
        %458 = vmatprep.subr.bf16.mxu0 0
        %459 = vmatpush2.bf16.msra.mxu0 0
        %460 = vmatprep.subr.bf16.mxu0 0
        %461 = vmatpush2.bf16.msra.mxu0 0
        %462 = vmatprep.subr.bf16.mxu0 0
        %463 = vmatpush2.bf16.msra.mxu0 0
        %464 = vmatprep.mubr.bf16.mxu0 0
        %465 = vmatmul.mubr.bf16.gmra.mxu0 %v421
        %v466 = vpop.f32.mrf.mxu0
        %v467 = vadd.f32 0.0, %v466
        %v468 = vpop.f32.mrf.mxu0
        %v469 = vadd.f32 0.0, %v468
        %v470 = vpop.f32.mrf.mxu0
        %v471 = vpop.f32.mrf.mxu0
        %472 = vdwg.mxu0
        %473 = vmatprep.subr.bf16.mxu0 0
        %474 = vmatpush1.bf16.msra.mxu0 0
        %475 = vmatprep.subr.bf16.mxu0 0
        %476 = vmatpush1.bf16.msra.mxu0 0
        %477 = vmatprep.subr.bf16.mxu0 0
        %478 = vmatpush1.bf16.msra.mxu0 0
        %479 = vmatprep.subr.bf16.mxu0 0
        %480 = vmatpush1.bf16.msra.mxu0 0
        %481 = vmatprep.subr.bf16.mxu0 0
        %482 = vmatpush1.bf16.msra.mxu0 0
        %483 = vmatprep.subr.bf16.mxu0 0
        %484 = vmatpush1.bf16.msra.mxu0 0
        %485 = vmatprep.subr.bf16.mxu0 0
        %486 = vmatpush1.bf16.msra.mxu0 0
        %487 = vmatprep.subr.bf16.mxu0 0
        %488 = vmatpush1.bf16.msra.mxu0 %v430
        %489 = vmatprep.subr.bf16.mxu0 0
        %490 = vmatpush2.bf16.msra.mxu0 0
        %491 = vmatprep.subr.bf16.mxu0 0
        %492 = vmatpush2.bf16.msra.mxu0 0
        %493 = vmatprep.subr.bf16.mxu0 0
        %494 = vmatpush2.bf16.msra.mxu0 0
        %495 = vmatprep.subr.bf16.mxu0 0
        %496 = vmatpush2.bf16.msra.mxu0 0
        %497 = vmatprep.subr.bf16.mxu0 0
        %498 = vmatpush2.bf16.msra.mxu0 0
        %499 = vmatprep.subr.bf16.mxu0 0
        %500 = vmatpush2.bf16.msra.mxu0 0
        %501 = vmatprep.subr.bf16.mxu0 0
        %502 = vmatpush2.bf16.msra.mxu0 0
        %503 = vmatprep.subr.bf16.mxu0 0
        %504 = vmatpush2.bf16.msra.mxu0 0
        %505 = vmatprep.mubr.bf16.mxu0 0
        %506 = vmatmul.mubr.bf16.gmra.mxu0 %v421
        %v507 = vpop.f32.mrf.mxu0
        %v508 = vadd.f32 0.0, %v507
        %v509 = vpop.f32.mrf.mxu0
        %v510 = vpop.f32.mrf.mxu0
        %v511 = vpop.f32.mrf.mxu0
        %512 = vdwg.mxu0
        %v513 = vadd.f32 %v363, %v467
        %v514 = vadd.f32 %v365, %v469
        %v515 = vadd.f32 %v404, %v508
        %s516 = scalar_lea.vmem %s1, 12
        %v517 = vld [vmem:[%s516] sm:$0xf]
        %518 = vrot.lane.b32.xlu0 %v203, 110
        %v519 = vpop.permute.xlu0 %518
        %520 = vrot.lane.b32.xlu0 %v204, 110
        %v521 = vpop.permute.xlu0 %520
        %522 = vrot.lane.b32.xlu0 %v205, 110
        %v523 = vpop.permute.xlu0 %522
        %vm524 = vcmask 900096
        %v525 = vsel %vm524, %v519, %v521
        %v526 = vsel %vm524, %v521, %v523
        %v528 = vsel %vm221, %v517, 0
        %v531 = vsel %vm225, %v525, 0
        %v534 = vsel %vm225, %v526, 0
        %v537 = vsel %vm225, %v523, 0
        %539 = vmatprep.subr.bf16.mxu0 0
        %540 = vmatpush1.bf16.msra.mxu0 0
        %541 = vmatprep.subr.bf16.mxu0 0
        %542 = vmatpush1.bf16.msra.mxu0 0
        %543 = vmatprep.subr.bf16.mxu0 0
        %544 = vmatpush1.bf16.msra.mxu0 0
        %545 = vmatprep.subr.bf16.mxu0 0
        %546 = vmatpush1.bf16.msra.mxu0 0
        %547 = vmatprep.subr.bf16.mxu0 0
        %548 = vmatpush1.bf16.msra.mxu0 0
        %549 = vmatprep.subr.bf16.mxu0 0
        %550 = vmatpush1.bf16.msra.mxu0 0
        %551 = vmatprep.subr.bf16.mxu0 0
        %552 = vmatpush1.bf16.msra.mxu0 0
        %553 = vmatprep.subr.bf16.mxu0 %v534
        %554 = vmatpush1.bf16.msra.mxu0 %v531
        %555 = vmatprep.subr.bf16.mxu0 0
        %556 = vmatpush2.bf16.msra.mxu0 0
        %557 = vmatprep.subr.bf16.mxu0 0
        %558 = vmatpush2.bf16.msra.mxu0 0
        %559 = vmatprep.subr.bf16.mxu0 0
        %560 = vmatpush2.bf16.msra.mxu0 0
        %561 = vmatprep.subr.bf16.mxu0 0
        %562 = vmatpush2.bf16.msra.mxu0 0
        %563 = vmatprep.subr.bf16.mxu0 0
        %564 = vmatpush2.bf16.msra.mxu0 0
        %565 = vmatprep.subr.bf16.mxu0 0
        %566 = vmatpush2.bf16.msra.mxu0 0
        %567 = vmatprep.subr.bf16.mxu0 0
        %568 = vmatpush2.bf16.msra.mxu0 0
        %569 = vmatprep.subr.bf16.mxu0 0
        %570 = vmatpush2.bf16.msra.mxu0 0
        %571 = vmatprep.mubr.bf16.mxu0 0
        %572 = vmatmul.mubr.bf16.gmra.mxu0 %v528
        %v573 = vpop.f32.mrf.mxu0
        %v574 = vadd.f32 0.0, %v573
        %v575 = vpop.f32.mrf.mxu0
        %v576 = vadd.f32 0.0, %v575
        %v577 = vpop.f32.mrf.mxu0
        %v578 = vpop.f32.mrf.mxu0
        %579 = vdwg.mxu0
        %580 = vmatprep.subr.bf16.mxu0 0
        %581 = vmatpush1.bf16.msra.mxu0 0
        %582 = vmatprep.subr.bf16.mxu0 0
        %583 = vmatpush1.bf16.msra.mxu0 0
        %584 = vmatprep.subr.bf16.mxu0 0
        %585 = vmatpush1.bf16.msra.mxu0 0
        %586 = vmatprep.subr.bf16.mxu0 0
        %587 = vmatpush1.bf16.msra.mxu0 0
        %588 = vmatprep.subr.bf16.mxu0 0
        %589 = vmatpush1.bf16.msra.mxu0 0
        %590 = vmatprep.subr.bf16.mxu0 0
        %591 = vmatpush1.bf16.msra.mxu0 0
        %592 = vmatprep.subr.bf16.mxu0 0
        %593 = vmatpush1.bf16.msra.mxu0 0
        %594 = vmatprep.subr.bf16.mxu0 0
        %595 = vmatpush1.bf16.msra.mxu0 %v537
        %596 = vmatprep.subr.bf16.mxu0 0
        %597 = vmatpush2.bf16.msra.mxu0 0
        %598 = vmatprep.subr.bf16.mxu0 0
        %599 = vmatpush2.bf16.msra.mxu0 0
        %600 = vmatprep.subr.bf16.mxu0 0
        %601 = vmatpush2.bf16.msra.mxu0 0
        %602 = vmatprep.subr.bf16.mxu0 0
        %603 = vmatpush2.bf16.msra.mxu0 0
        %604 = vmatprep.subr.bf16.mxu0 0
        %605 = vmatpush2.bf16.msra.mxu0 0
        %606 = vmatprep.subr.bf16.mxu0 0
        %607 = vmatpush2.bf16.msra.mxu0 0
        %608 = vmatprep.subr.bf16.mxu0 0
        %609 = vmatpush2.bf16.msra.mxu0 0
        %610 = vmatprep.subr.bf16.mxu0 0
        %611 = vmatpush2.bf16.msra.mxu0 0
        %612 = vmatprep.mubr.bf16.mxu0 0
        %613 = vmatmul.mubr.bf16.gmra.mxu0 %v528
        %v614 = vpop.f32.mrf.mxu0
        %v615 = vadd.f32 0.0, %v614
        %v616 = vpop.f32.mrf.mxu0
        %v617 = vpop.f32.mrf.mxu0
        %v618 = vpop.f32.mrf.mxu0
        %619 = vdwg.mxu0
        %v620 = vadd.f32 %v513, %v574
        %v621 = vadd.f32 %v514, %v576
        %v622 = vadd.f32 %v515, %v615
        %s623 = scalar_lea.vmem %s1, 16
        %v624 = vld [vmem:[%s623] sm:$0xf]
        %625 = vrot.lane.b32.xlu0 %v203, 109
        %v626 = vpop.permute.xlu0 %625
        %627 = vrot.lane.b32.xlu0 %v204, 109
        %v628 = vpop.permute.xlu0 %627
        %629 = vrot.lane.b32.xlu0 %v205, 109
        %v630 = vpop.permute.xlu0 %629
        %vm631 = vcmask 891904
        %v632 = vsel %vm631, %v626, %v628
        %v633 = vsel %vm631, %v628, %v630
        %v635 = vsel %vm221, %v624, 0
        %v638 = vsel %vm225, %v632, 0
        %v641 = vsel %vm225, %v633, 0
        %v644 = vsel %vm225, %v630, 0
        %646 = vmatprep.subr.bf16.mxu0 0
        %647 = vmatpush1.bf16.msra.mxu0 0
        %648 = vmatprep.subr.bf16.mxu0 0
        %649 = vmatpush1.bf16.msra.mxu0 0
        %650 = vmatprep.subr.bf16.mxu0 0
        %651 = vmatpush1.bf16.msra.mxu0 0
        %652 = vmatprep.subr.bf16.mxu0 0
        %653 = vmatpush1.bf16.msra.mxu0 0
        %654 = vmatprep.subr.bf16.mxu0 0
        %655 = vmatpush1.bf16.msra.mxu0 0
        %656 = vmatprep.subr.bf16.mxu0 0
        %657 = vmatpush1.bf16.msra.mxu0 0
        %658 = vmatprep.subr.bf16.mxu0 0
        %659 = vmatpush1.bf16.msra.mxu0 0
        %660 = vmatprep.subr.bf16.mxu0 %v641
        %661 = vmatpush1.bf16.msra.mxu0 %v638
        %662 = vmatprep.subr.bf16.mxu0 0
        %663 = vmatpush2.bf16.msra.mxu0 0
        %664 = vmatprep.subr.bf16.mxu0 0
        %665 = vmatpush2.bf16.msra.mxu0 0
        %666 = vmatprep.subr.bf16.mxu0 0
        %667 = vmatpush2.bf16.msra.mxu0 0
        %668 = vmatprep.subr.bf16.mxu0 0
        %669 = vmatpush2.bf16.msra.mxu0 0
        %670 = vmatprep.subr.bf16.mxu0 0
        %671 = vmatpush2.bf16.msra.mxu0 0
        %672 = vmatprep.subr.bf16.mxu0 0
        %673 = vmatpush2.bf16.msra.mxu0 0
        %674 = vmatprep.subr.bf16.mxu0 0
        %675 = vmatpush2.bf16.msra.mxu0 0
        %676 = vmatprep.subr.bf16.mxu0 0
        %677 = vmatpush2.bf16.msra.mxu0 0
        %678 = vmatprep.mubr.bf16.mxu0 0
        %679 = vmatmul.mubr.bf16.gmra.mxu0 %v635
        %v680 = vpop.f32.mrf.mxu0
        %v681 = vadd.f32 0.0, %v680
        %v682 = vpop.f32.mrf.mxu0
        %v683 = vadd.f32 0.0, %v682
        %v684 = vpop.f32.mrf.mxu0
        %v685 = vpop.f32.mrf.mxu0
        %686 = vdwg.mxu0
        %687 = vmatprep.subr.bf16.mxu0 0
        %688 = vmatpush1.bf16.msra.mxu0 0
        %689 = vmatprep.subr.bf16.mxu0 0
        %690 = vmatpush1.bf16.msra.mxu0 0
        %691 = vmatprep.subr.bf16.mxu0 0
        %692 = vmatpush1.bf16.msra.mxu0 0
        %693 = vmatprep.subr.bf16.mxu0 0
        %694 = vmatpush1.bf16.msra.mxu0 0
        %695 = vmatprep.subr.bf16.mxu0 0
        %696 = vmatpush1.bf16.msra.mxu0 0
        %697 = vmatprep.subr.bf16.mxu0 0
        %698 = vmatpush1.bf16.msra.mxu0 0
        %699 = vmatprep.subr.bf16.mxu0 0
        %700 = vmatpush1.bf16.msra.mxu0 0
        %701 = vmatprep.subr.bf16.mxu0 0
        %702 = vmatpush1.bf16.msra.mxu0 %v644
        %703 = vmatprep.subr.bf16.mxu0 0
        %704 = vmatpush2.bf16.msra.mxu0 0
        %705 = vmatprep.subr.bf16.mxu0 0
        %706 = vmatpush2.bf16.msra.mxu0 0
        %707 = vmatprep.subr.bf16.mxu0 0
        %708 = vmatpush2.bf16.msra.mxu0 0
        %709 = vmatprep.subr.bf16.mxu0 0
        %710 = vmatpush2.bf16.msra.mxu0 0
        %711 = vmatprep.subr.bf16.mxu0 0
        %712 = vmatpush2.bf16.msra.mxu0 0
        %713 = vmatprep.subr.bf16.mxu0 0
        %714 = vmatpush2.bf16.msra.mxu0 0
        %715 = vmatprep.subr.bf16.mxu0 0
        %716 = vmatpush2.bf16.msra.mxu0 0
        %717 = vmatprep.subr.bf16.mxu0 0
        %718 = vmatpush2.bf16.msra.mxu0 0
        %719 = vmatprep.mubr.bf16.mxu0 0
        %720 = vmatmul.mubr.bf16.gmra.mxu0 %v635
        %v721 = vpop.f32.mrf.mxu0
        %v722 = vadd.f32 0.0, %v721
        %v723 = vpop.f32.mrf.mxu0
        %v724 = vpop.f32.mrf.mxu0
        %v725 = vpop.f32.mrf.mxu0
        %726 = vdwg.mxu0
        %v727 = vadd.f32 %v620, %v681
        %v728 = vadd.f32 %v621, %v683
        %v729 = vadd.f32 %v622, %v722
        %s730 = scalar_lea.vmem %s1, 20
        %v731 = vld [vmem:[%s730] sm:$0xf]
        %732 = vrot.lane.b32.xlu0 %v203, 108
        %v733 = vpop.permute.xlu0 %732
        %734 = vrot.lane.b32.xlu0 %v204, 108
        %v735 = vpop.permute.xlu0 %734
        %736 = vrot.lane.b32.xlu0 %v205, 108
        %v737 = vpop.permute.xlu0 %736
        %vm738 = vcmask 883712
        %v739 = vsel %vm738, %v733, %v735
        %v740 = vsel %vm738, %v735, %v737
        %v742 = vsel %vm221, %v731, 0
        %v745 = vsel %vm225, %v739, 0
        %v748 = vsel %vm225, %v740, 0
        %v751 = vsel %vm225, %v737, 0
        %753 = vmatprep.subr.bf16.mxu0 0
        %754 = vmatpush1.bf16.msra.mxu0 0
        %755 = vmatprep.subr.bf16.mxu0 0
        %756 = vmatpush1.bf16.msra.mxu0 0
        %757 = vmatprep.subr.bf16.mxu0 0
        %758 = vmatpush1.bf16.msra.mxu0 0
        %759 = vmatprep.subr.bf16.mxu0 0
        %760 = vmatpush1.bf16.msra.mxu0 0
        %761 = vmatprep.subr.bf16.mxu0 0
        %762 = vmatpush1.bf16.msra.mxu0 0
        %763 = vmatprep.subr.bf16.mxu0 0
        %764 = vmatpush1.bf16.msra.mxu0 0
        %765 = vmatprep.subr.bf16.mxu0 0
        %766 = vmatpush1.bf16.msra.mxu0 0
        %767 = vmatprep.subr.bf16.mxu0 %v748
        %768 = vmatpush1.bf16.msra.mxu0 %v745
        %769 = vmatprep.subr.bf16.mxu0 0
        %770 = vmatpush2.bf16.msra.mxu0 0
        %771 = vmatprep.subr.bf16.mxu0 0
        %772 = vmatpush2.bf16.msra.mxu0 0
        %773 = vmatprep.subr.bf16.mxu0 0
        %774 = vmatpush2.bf16.msra.mxu0 0
        %775 = vmatprep.subr.bf16.mxu0 0
        %776 = vmatpush2.bf16.msra.mxu0 0
        %777 = vmatprep.subr.bf16.mxu0 0
        %778 = vmatpush2.bf16.msra.mxu0 0
        %779 = vmatprep.subr.bf16.mxu0 0
        %780 = vmatpush2.bf16.msra.mxu0 0
        %781 = vmatprep.subr.bf16.mxu0 0
        %782 = vmatpush2.bf16.msra.mxu0 0
        %783 = vmatprep.subr.bf16.mxu0 0
        %784 = vmatpush2.bf16.msra.mxu0 0
        %785 = vmatprep.mubr.bf16.mxu0 0
        %786 = vmatmul.mubr.bf16.gmra.mxu0 %v742
        %v787 = vpop.f32.mrf.mxu0
        %v788 = vadd.f32 0.0, %v787
        %v789 = vpop.f32.mrf.mxu0
        %v790 = vadd.f32 0.0, %v789
        %v791 = vpop.f32.mrf.mxu0
        %v792 = vpop.f32.mrf.mxu0
        %793 = vdwg.mxu0
        %794 = vmatprep.subr.bf16.mxu0 0
        %795 = vmatpush1.bf16.msra.mxu0 0
        %796 = vmatprep.subr.bf16.mxu0 0
        %797 = vmatpush1.bf16.msra.mxu0 0
        %798 = vmatprep.subr.bf16.mxu0 0
        %799 = vmatpush1.bf16.msra.mxu0 0
        %800 = vmatprep.subr.bf16.mxu0 0
        %801 = vmatpush1.bf16.msra.mxu0 0
        %802 = vmatprep.subr.bf16.mxu0 0
        %803 = vmatpush1.bf16.msra.mxu0 0
        %804 = vmatprep.subr.bf16.mxu0 0
        %805 = vmatpush1.bf16.msra.mxu0 0
        %806 = vmatprep.subr.bf16.mxu0 0
        %807 = vmatpush1.bf16.msra.mxu0 0
        %808 = vmatprep.subr.bf16.mxu0 0
        %809 = vmatpush1.bf16.msra.mxu0 %v751
        %810 = vmatprep.subr.bf16.mxu0 0
        %811 = vmatpush2.bf16.msra.mxu0 0
        %812 = vmatprep.subr.bf16.mxu0 0
        %813 = vmatpush2.bf16.msra.mxu0 0
        %814 = vmatprep.subr.bf16.mxu0 0
        %815 = vmatpush2.bf16.msra.mxu0 0
        %816 = vmatprep.subr.bf16.mxu0 0
        %817 = vmatpush2.bf16.msra.mxu0 0
        %818 = vmatprep.subr.bf16.mxu0 0
        %819 = vmatpush2.bf16.msra.mxu0 0
        %820 = vmatprep.subr.bf16.mxu0 0
        %821 = vmatpush2.bf16.msra.mxu0 0
        %822 = vmatprep.subr.bf16.mxu0 0
        %823 = vmatpush2.bf16.msra.mxu0 0
        %824 = vmatprep.subr.bf16.mxu0 0
        %825 = vmatpush2.bf16.msra.mxu0 0
        %826 = vmatprep.mubr.bf16.mxu0 0
        %827 = vmatmul.mubr.bf16.gmra.mxu0 %v742
        %v828 = vpop.f32.mrf.mxu0
        %v829 = vadd.f32 0.0, %v828
        %v830 = vpop.f32.mrf.mxu0
        %v831 = vpop.f32.mrf.mxu0
        %v832 = vpop.f32.mrf.mxu0
        %833 = vdwg.mxu0
        %v834 = vadd.f32 %v727, %v788
        %v835 = vadd.f32 %v728, %v790
        %v836 = vadd.f32 %v729, %v829
        %s837 = scalar_lea.vmem %s1, 24
        %v838 = vld [vmem:[%s837] sm:$0xf]
        %839 = vrot.lane.b32.xlu0 %v203, 92
        %v840 = vpop.permute.xlu0 %839
        %841 = vrot.lane.b32.xlu0 %v204, 92
        %v842 = vpop.permute.xlu0 %841
        %843 = vrot.lane.b32.xlu0 %v205, 92
        %v844 = vpop.permute.xlu0 %843
        %vm845 = vcmask 752640
        %v846 = vsel %vm845, %v840, %v842
        %v847 = vsel %vm845, %v842, %v844
        %v849 = vsel %vm221, %v838, 0
        %v852 = vsel %vm225, %v846, 0
        %v855 = vsel %vm225, %v847, 0
        %v858 = vsel %vm225, %v844, 0
        %860 = vmatprep.subr.bf16.mxu0 0
        %861 = vmatpush1.bf16.msra.mxu0 0
        %862 = vmatprep.subr.bf16.mxu0 0
        %863 = vmatpush1.bf16.msra.mxu0 0
        %864 = vmatprep.subr.bf16.mxu0 0
        %865 = vmatpush1.bf16.msra.mxu0 0
        %866 = vmatprep.subr.bf16.mxu0 0
        %867 = vmatpush1.bf16.msra.mxu0 0
        %868 = vmatprep.subr.bf16.mxu0 0
        %869 = vmatpush1.bf16.msra.mxu0 0
        %870 = vmatprep.subr.bf16.mxu0 0
        %871 = vmatpush1.bf16.msra.mxu0 0
        %872 = vmatprep.subr.bf16.mxu0 0
        %873 = vmatpush1.bf16.msra.mxu0 0
        %874 = vmatprep.subr.bf16.mxu0 %v855
        %875 = vmatpush1.bf16.msra.mxu0 %v852
        %876 = vmatprep.subr.bf16.mxu0 0
        %877 = vmatpush2.bf16.msra.mxu0 0
        %878 = vmatprep.subr.bf16.mxu0 0
        %879 = vmatpush2.bf16.msra.mxu0 0
        %880 = vmatprep.subr.bf16.mxu0 0
        %881 = vmatpush2.bf16.msra.mxu0 0
        %882 = vmatprep.subr.bf16.mxu0 0
        %883 = vmatpush2.bf16.msra.mxu0 0
        %884 = vmatprep.subr.bf16.mxu0 0
        %885 = vmatpush2.bf16.msra.mxu0 0
        %886 = vmatprep.subr.bf16.mxu0 0
        %887 = vmatpush2.bf16.msra.mxu0 0
        %888 = vmatprep.subr.bf16.mxu0 0
        %889 = vmatpush2.bf16.msra.mxu0 0
        %890 = vmatprep.subr.bf16.mxu0 0
        %891 = vmatpush2.bf16.msra.mxu0 0
        %892 = vmatprep.mubr.bf16.mxu0 0
        %893 = vmatmul.mubr.bf16.gmra.mxu0 %v849
        %v894 = vpop.f32.mrf.mxu0
        %v895 = vadd.f32 0.0, %v894
        %v896 = vpop.f32.mrf.mxu0
        %v897 = vadd.f32 0.0, %v896
        %v898 = vpop.f32.mrf.mxu0
        %v899 = vpop.f32.mrf.mxu0
        %900 = vdwg.mxu0
        %901 = vmatprep.subr.bf16.mxu0 0
        %902 = vmatpush1.bf16.msra.mxu0 0
        %903 = vmatprep.subr.bf16.mxu0 0
        %904 = vmatpush1.bf16.msra.mxu0 0
        %905 = vmatprep.subr.bf16.mxu0 0
        %906 = vmatpush1.bf16.msra.mxu0 0
        %907 = vmatprep.subr.bf16.mxu0 0
        %908 = vmatpush1.bf16.msra.mxu0 0
        %909 = vmatprep.subr.bf16.mxu0 0
        %910 = vmatpush1.bf16.msra.mxu0 0
        %911 = vmatprep.subr.bf16.mxu0 0
        %912 = vmatpush1.bf16.msra.mxu0 0
        %913 = vmatprep.subr.bf16.mxu0 0
        %914 = vmatpush1.bf16.msra.mxu0 0
        %915 = vmatprep.subr.bf16.mxu0 0
        %916 = vmatpush1.bf16.msra.mxu0 %v858
        %917 = vmatprep.subr.bf16.mxu0 0
        %918 = vmatpush2.bf16.msra.mxu0 0
        %919 = vmatprep.subr.bf16.mxu0 0
        %920 = vmatpush2.bf16.msra.mxu0 0
        %921 = vmatprep.subr.bf16.mxu0 0
        %922 = vmatpush2.bf16.msra.mxu0 0
        %923 = vmatprep.subr.bf16.mxu0 0
        %924 = vmatpush2.bf16.msra.mxu0 0
        %925 = vmatprep.subr.bf16.mxu0 0
        %926 = vmatpush2.bf16.msra.mxu0 0
        %927 = vmatprep.subr.bf16.mxu0 0
        %928 = vmatpush2.bf16.msra.mxu0 0
        %929 = vmatprep.subr.bf16.mxu0 0
        %930 = vmatpush2.bf16.msra.mxu0 0
        %931 = vmatprep.subr.bf16.mxu0 0
        %932 = vmatpush2.bf16.msra.mxu0 0
        %933 = vmatprep.mubr.bf16.mxu0 0
        %934 = vmatmul.mubr.bf16.gmra.mxu0 %v849
        %v935 = vpop.f32.mrf.mxu0
        %v936 = vadd.f32 0.0, %v935
        %v937 = vpop.f32.mrf.mxu0
        %v938 = vpop.f32.mrf.mxu0
        %v939 = vpop.f32.mrf.mxu0
        %940 = vdwg.mxu0
        %v941 = vadd.f32 %v834, %v895
        %v942 = vadd.f32 %v835, %v897
        %v943 = vadd.f32 %v836, %v936
        %s944 = scalar_lea.vmem %s1, 28
        %v945 = vld [vmem:[%s944] sm:$0xf]
        %946 = vrot.lane.b32.xlu0 %v203, 91
        %v947 = vpop.permute.xlu0 %946
        %948 = vrot.lane.b32.xlu0 %v204, 91
        %v949 = vpop.permute.xlu0 %948
        %950 = vrot.lane.b32.xlu0 %v205, 91
        %v951 = vpop.permute.xlu0 %950
        %vm952 = vcmask 744448
        %v953 = vsel %vm952, %v947, %v949
        %v954 = vsel %vm952, %v949, %v951
        %v956 = vsel %vm221, %v945, 0
        %v959 = vsel %vm225, %v953, 0
        %v962 = vsel %vm225, %v954, 0
        %v965 = vsel %vm225, %v951, 0
        %967 = vmatprep.subr.bf16.mxu0 0
        %968 = vmatpush1.bf16.msra.mxu0 0
        %969 = vmatprep.subr.bf16.mxu0 0
        %970 = vmatpush1.bf16.msra.mxu0 0
        %971 = vmatprep.subr.bf16.mxu0 0
        %972 = vmatpush1.bf16.msra.mxu0 0
        %973 = vmatprep.subr.bf16.mxu0 0
        %974 = vmatpush1.bf16.msra.mxu0 0
        %975 = vmatprep.subr.bf16.mxu0 0
        %976 = vmatpush1.bf16.msra.mxu0 0
        %977 = vmatprep.subr.bf16.mxu0 0
        %978 = vmatpush1.bf16.msra.mxu0 0
        %979 = vmatprep.subr.bf16.mxu0 0
        %980 = vmatpush1.bf16.msra.mxu0 0
        %981 = vmatprep.subr.bf16.mxu0 %v962
        %982 = vmatpush1.bf16.msra.mxu0 %v959
        %983 = vmatprep.subr.bf16.mxu0 0
        %984 = vmatpush2.bf16.msra.mxu0 0
        %985 = vmatprep.subr.bf16.mxu0 0
        %986 = vmatpush2.bf16.msra.mxu0 0
        %987 = vmatprep.subr.bf16.mxu0 0
        %988 = vmatpush2.bf16.msra.mxu0 0
        %989 = vmatprep.subr.bf16.mxu0 0
        %990 = vmatpush2.bf16.msra.mxu0 0
        %991 = vmatprep.subr.bf16.mxu0 0
        %992 = vmatpush2.bf16.msra.mxu0 0
        %993 = vmatprep.subr.bf16.mxu0 0
        %994 = vmatpush2.bf16.msra.mxu0 0
        %995 = vmatprep.subr.bf16.mxu0 0
        %996 = vmatpush2.bf16.msra.mxu0 0
        %997 = vmatprep.subr.bf16.mxu0 0
        %998 = vmatpush2.bf16.msra.mxu0 0
        %999 = vmatprep.mubr.bf16.mxu0 0
        %1000 = vmatmul.mubr.bf16.gmra.mxu0 %v956
        %v1001 = vpop.f32.mrf.mxu0
        %v1002 = vadd.f32 0.0, %v1001
        %v1003 = vpop.f32.mrf.mxu0
        %v1004 = vadd.f32 0.0, %v1003
        %v1005 = vpop.f32.mrf.mxu0
        %v1006 = vpop.f32.mrf.mxu0
        %1007 = vdwg.mxu0
        %1008 = vmatprep.subr.bf16.mxu0 0
        %1009 = vmatpush1.bf16.msra.mxu0 0
        %1010 = vmatprep.subr.bf16.mxu0 0
        %1011 = vmatpush1.bf16.msra.mxu0 0
        %1012 = vmatprep.subr.bf16.mxu0 0
        %1013 = vmatpush1.bf16.msra.mxu0 0
        %1014 = vmatprep.subr.bf16.mxu0 0
        %1015 = vmatpush1.bf16.msra.mxu0 0
        %1016 = vmatprep.subr.bf16.mxu0 0
        %1017 = vmatpush1.bf16.msra.mxu0 0
        %1018 = vmatprep.subr.bf16.mxu0 0
        %1019 = vmatpush1.bf16.msra.mxu0 0
        %1020 = vmatprep.subr.bf16.mxu0 0
        %1021 = vmatpush1.bf16.msra.mxu0 0
        %1022 = vmatprep.subr.bf16.mxu0 0
        %1023 = vmatpush1.bf16.msra.mxu0 %v965
        %1024 = vmatprep.subr.bf16.mxu0 0
        %1025 = vmatpush2.bf16.msra.mxu0 0
        %1026 = vmatprep.subr.bf16.mxu0 0
        %1027 = vmatpush2.bf16.msra.mxu0 0
        %1028 = vmatprep.subr.bf16.mxu0 0
        %1029 = vmatpush2.bf16.msra.mxu0 0
        %1030 = vmatprep.subr.bf16.mxu0 0
        %1031 = vmatpush2.bf16.msra.mxu0 0
        %1032 = vmatprep.subr.bf16.mxu0 0
        %1033 = vmatpush2.bf16.msra.mxu0 0
        %1034 = vmatprep.subr.bf16.mxu0 0
        %1035 = vmatpush2.bf16.msra.mxu0 0
        %1036 = vmatprep.subr.bf16.mxu0 0
        %1037 = vmatpush2.bf16.msra.mxu0 0
        %1038 = vmatprep.subr.bf16.mxu0 0
        %1039 = vmatpush2.bf16.msra.mxu0 0
        %1040 = vmatprep.mubr.bf16.mxu0 0
        %1041 = vmatmul.mubr.bf16.gmra.mxu0 %v956
        %v1042 = vpop.f32.mrf.mxu0
        %v1043 = vadd.f32 0.0, %v1042
        %v1044 = vpop.f32.mrf.mxu0
        %v1045 = vpop.f32.mrf.mxu0
        %v1046 = vpop.f32.mrf.mxu0
        %1047 = vdwg.mxu0
        %v1048 = vadd.f32 %v941, %v1002
        %v1049 = vadd.f32 %v942, %v1004
        %v1050 = vadd.f32 %v943, %v1043
        %s1051 = scalar_lea.vmem %s1, 32
        %v1052 = vld [vmem:[%s1051] sm:$0xf]
        %1053 = vrot.lane.b32.xlu0 %v203, 90
        %v1054 = vpop.permute.xlu0 %1053
        %1055 = vrot.lane.b32.xlu0 %v204, 90
        %v1056 = vpop.permute.xlu0 %1055
        %1057 = vrot.lane.b32.xlu0 %v205, 90
        %v1058 = vpop.permute.xlu0 %1057
        %vm1059 = vcmask 736256
        %v1060 = vsel %vm1059, %v1054, %v1056
        %v1061 = vsel %vm1059, %v1056, %v1058
        %v1063 = vsel %vm221, %v1052, 0
        %v1066 = vsel %vm225, %v1060, 0
        %v1069 = vsel %vm225, %v1061, 0
        %v1072 = vsel %vm225, %v1058, 0
        %1074 = vmatprep.subr.bf16.mxu0 0
        %1075 = vmatpush1.bf16.msra.mxu0 0
        %1076 = vmatprep.subr.bf16.mxu0 0
        %1077 = vmatpush1.bf16.msra.mxu0 0
        %1078 = vmatprep.subr.bf16.mxu0 0
        %1079 = vmatpush1.bf16.msra.mxu0 0
        %1080 = vmatprep.subr.bf16.mxu0 0
        %1081 = vmatpush1.bf16.msra.mxu0 0
        %1082 = vmatprep.subr.bf16.mxu0 0
        %1083 = vmatpush1.bf16.msra.mxu0 0
        %1084 = vmatprep.subr.bf16.mxu0 0
        %1085 = vmatpush1.bf16.msra.mxu0 0
        %1086 = vmatprep.subr.bf16.mxu0 0
        %1087 = vmatpush1.bf16.msra.mxu0 0
        %1088 = vmatprep.subr.bf16.mxu0 %v1069
        %1089 = vmatpush1.bf16.msra.mxu0 %v1066
        %1090 = vmatprep.subr.bf16.mxu0 0
        %1091 = vmatpush2.bf16.msra.mxu0 0
        %1092 = vmatprep.subr.bf16.mxu0 0
        %1093 = vmatpush2.bf16.msra.mxu0 0
        %1094 = vmatprep.subr.bf16.mxu0 0
        %1095 = vmatpush2.bf16.msra.mxu0 0
        %1096 = vmatprep.subr.bf16.mxu0 0
        %1097 = vmatpush2.bf16.msra.mxu0 0
        %1098 = vmatprep.subr.bf16.mxu0 0
        %1099 = vmatpush2.bf16.msra.mxu0 0
        %1100 = vmatprep.subr.bf16.mxu0 0
        %1101 = vmatpush2.bf16.msra.mxu0 0
        %1102 = vmatprep.subr.bf16.mxu0 0
        %1103 = vmatpush2.bf16.msra.mxu0 0
        %1104 = vmatprep.subr.bf16.mxu0 0
        %1105 = vmatpush2.bf16.msra.mxu0 0
        %1106 = vmatprep.mubr.bf16.mxu0 0
        %1107 = vmatmul.mubr.bf16.gmra.mxu0 %v1063
        %v1108 = vpop.f32.mrf.mxu0
        %v1109 = vadd.f32 0.0, %v1108
        %v1110 = vpop.f32.mrf.mxu0
        %v1111 = vadd.f32 0.0, %v1110
        %v1112 = vpop.f32.mrf.mxu0
        %v1113 = vpop.f32.mrf.mxu0
        %1114 = vdwg.mxu0
        %1115 = vmatprep.subr.bf16.mxu0 0
        %1116 = vmatpush1.bf16.msra.mxu0 0
        %1117 = vmatprep.subr.bf16.mxu0 0
        %1118 = vmatpush1.bf16.msra.mxu0 0
        %1119 = vmatprep.subr.bf16.mxu0 0
        %1120 = vmatpush1.bf16.msra.mxu0 0
        %1121 = vmatprep.subr.bf16.mxu0 0
        %1122 = vmatpush1.bf16.msra.mxu0 0
        %1123 = vmatprep.subr.bf16.mxu0 0
        %1124 = vmatpush1.bf16.msra.mxu0 0
        %1125 = vmatprep.subr.bf16.mxu0 0
        %1126 = vmatpush1.bf16.msra.mxu0 0
        %1127 = vmatprep.subr.bf16.mxu0 0
        %1128 = vmatpush1.bf16.msra.mxu0 0
        %1129 = vmatprep.subr.bf16.mxu0 0
        %1130 = vmatpush1.bf16.msra.mxu0 %v1072
        %1131 = vmatprep.subr.bf16.mxu0 0
        %1132 = vmatpush2.bf16.msra.mxu0 0
        %1133 = vmatprep.subr.bf16.mxu0 0
        %1134 = vmatpush2.bf16.msra.mxu0 0
        %1135 = vmatprep.subr.bf16.mxu0 0
        %1136 = vmatpush2.bf16.msra.mxu0 0
        %1137 = vmatprep.subr.bf16.mxu0 0
        %1138 = vmatpush2.bf16.msra.mxu0 0
        %1139 = vmatprep.subr.bf16.mxu0 0
        %1140 = vmatpush2.bf16.msra.mxu0 0
        %1141 = vmatprep.subr.bf16.mxu0 0
        %1142 = vmatpush2.bf16.msra.mxu0 0
        %1143 = vmatprep.subr.bf16.mxu0 0
        %1144 = vmatpush2.bf16.msra.mxu0 0
        %1145 = vmatprep.subr.bf16.mxu0 0
        %1146 = vmatpush2.bf16.msra.mxu0 0
        %1147 = vmatprep.mubr.bf16.mxu0 0
        %1148 = vmatmul.mubr.bf16.gmra.mxu0 %v1063
        %v1149 = vpop.f32.mrf.mxu0
        %v1150 = vadd.f32 0.0, %v1149
        %v1151 = vpop.f32.mrf.mxu0
        %v1152 = vpop.f32.mrf.mxu0
        %v1153 = vpop.f32.mrf.mxu0
        %1154 = vdwg.mxu0
        %v1155 = vadd.f32 %v1048, %v1109
        %v1156 = vadd.f32 %v1049, %v1111
        %v1157 = vadd.f32 %v1050, %v1150
        %v1159 = vlaneseq
        %v1160 = vshrl.u32 %v1159, 7
        %v1161 = vsub.s32 0, %v1160
        %v1162 = vrot.slane %v202, %v1161
        %v1163 = vlaneseq
        %v1164 = vshrl.u32 %v1163, 7
        %v1165 = vsub.s32 1, %v1164
        %v1166 = vrot.slane %v202, %v1165
        %v1167 = vlaneseq
        %v1168 = vshrl.u32 %v1167, 7
        %v1169 = vsub.s32 2, %v1168
        %v1170 = vrot.slane %v202, %v1169
        %v1174 = vmul.f32 %v1155, %v1162
        %v1175 = vmul.f32 %v1156, %v1166
        %v1176 = vmul.f32 %v1157, %v1170
        %v1177 = vadd.f32 %v1174, %v1175
        %vm1178 = vcmask 261120
        %v1179 = vsel %vm1178, %v1176, 0.0
        %v1180 = vadd.f32 %v1177, %v1179
        %1181 = vadd.xlane.f32.xlu0 %v1180
        %v1182 = vpop.xlane.xlu0 %1181
        %v1183 = vmul.f32 %v1174, %v1155
        %v1184 = vmul.f32 %v1175, %v1156
        %v1185 = vmul.f32 %v1176, %v1157
        %v1186 = vadd.f32 %v1183, %v1184
        %v1187 = vsel %vm1178, %v1185, 0.0
        %v1188 = vadd.f32 %v1186, %v1187
        %1189 = vadd.xlane.f32.xlu0 %v1188
        %v1190 = vpop.xlane.xlu0 %1189
        %v1191 = vmul.f32 %v1182, 0.00390625
        %v1192 = vmul.f32 %v1190, 0.00390625
        %v1193 = vmul.f32 %v1191, %v1191
        %v1194 = vsub.f32 %v1192, %v1193
        %v1195 = vadd.f32 %v1194, 1e-05
        %v1196 = vrsqrt.pop %v1195
        %v1197 = vld [vmem:[%s2] sm:$0xff]
        %v1198 = vmul.f32 %v1197, %v1196
        %v1199 = vmul.f32 %v1191, %v1198
        %1201 = vrot.lane.b32.xlu0 %v1199, 1
        %v1202 = vpop.permute.xlu0 %1201
        %v1204 = vsub.f32 %v1197, %v1202
        %1206 = vset.pattern.permute.xlu0 0
        %1207 = vperm.xlu0 %1206, %v1198
        %v1208 = vpop.permute.xlu0 %1207
        %v1210 = vmul.f32 %v1155, %v1208
        %v1211 = vmul.f32 %v1156, %v1208
        %v1212 = vmul.f32 %v1157, %v1208
        %1214 = vset.pattern.permute.xlu0 1
        %1215 = vperm.xlu0 %1214, %v1204
        %v1216 = vpop.permute.xlu0 %1215
        %v1218 = vadd.f32 %v1210, %v1216
        %v1219 = vadd.f32 %v1211, %v1216
        %v1220 = vadd.f32 %v1212, %v1216
        %vm1221 = vcmp.ge.f32.partialorder %v1218, 0.0
        %vm1222 = vcmp.ge.f32.partialorder %v1219, 0.0
        %vm1223 = vcmp.ge.f32.partialorder %v1220, 0.0
        %v1224 = vmul.f32 %v1218, 0.01
        %v1225 = vmul.f32 %v1219, 0.01
        %v1226 = vmul.f32 %v1220, 0.01
        %v1227 = vsel %vm1221, %v1218, %v1224
        %v1228 = vsel %vm1222, %v1219, %v1225
        %v1229 = vsel %vm1223, %v1220, %v1226
        %1230 = vst [vmem:[%s190] sm:$0xff] %v1227
        %1231 = vst [vmem:[%s190 + $0x8] sm:$0xff] %v1228
        %1232 = vst.msk [vmem:[%s190 + $0x10] sm:$0xff] %vm1178, %v1229
        %s1233 = sand.u32 %s115, 1
        %s1234 = scalar_lea.sflag [#allocation3], %s1233
        %s1235 = sand.u32 %s115, 1
        %s1236 = smul.addr %s1235, 24
        %s1237 = scalar_lea.vmem [#allocation2], %s1236
        // Predicated region
        $region37: #{tpu_custom_call.1} parent=35 // pred_check
          %p1238 = pneg %p125
        $region38: #{tpu_custom_call.1} parent=35 // pred_check_branch
          %1240 = sbr.rel (%p1238) target = $region40
        $region39: #{tpu_custom_call.1} parent=35 // pred_region
          %s1242 = ssub.s32 384, 384
          %1243 = vsyncadd %s1234, %s1242
          %s1244 = smul.addr %s18, 3
          %s1245 = smul.addr %s1244, 128
          %s1246 = scalar_lea.hbm %s4, %s1245
          %s1248 = sshll.u32 %s1237, 4
          %s1249 = int_to_ptr.vmem [resolvable:$true] %s1248
          %1251 = dma.vmem_to_hbm [thread:$0]  %s1249, 384, %s1246, %s1234
        $region40: #{tpu_custom_call.1} parent=35 // pred_fallthru
          _
      $region36: #{tpu_custom_call.1} parent=5 // pred_fallthru
        _
      %p1252 = scmp.le.s32.totalorder 2, %s13
      // Predicated region
      $region41: #{tpu_custom_call.1} parent=5 // pred_check
        %p1253 = pneg %p1252
      $region42: #{tpu_custom_call.1} parent=5 // pred_check_branch
        %1255 = sbr.rel (%p1253) target = $region44
      $region43: #{tpu_custom_call.1} parent=5 // pred_region
        %s1256 = ssub.s32 %s13, 2
        // Predicated region
        $region45: #{tpu_custom_call.1} parent=43 // pred_check
          %p1257 = pneg %p131
        $region46: #{tpu_custom_call.1} parent=43 // pred_check_branch
          %1259 = sbr.rel (%p1257) target = $region48
        $region47: #{tpu_custom_call.1} parent=43 // pred_region
          %s1260 = sand.u32 %s116, 1
          %s1261 = scalar_lea.sflag [#allocation3], %s1260
          %s1262 = sand.u32 %s116, 1
          %s1263 = smul.addr %s1262, 24
          %s1264 = scalar_lea.vmem [#allocation2], %s1263
          %1265 = dma.done %s1261, 384
        $region48: #{tpu_custom_call.1} parent=43 // pred_fallthru
          _
      $region44: #{tpu_custom_call.1} parent=5 // pred_fallthru
        _
    $region6: #{tpu_custom_call.1} parent=1 // loop_footer
      %s17 = sadd.s32 1, %s13
    $region7: #{tpu_custom_call.1} parent=1 // loop_footer_branch
      %12 = sbr.rel target = $region3
    $region8: #{tpu_custom_call.1} parent=1 // loop_exit
      _
    %1266 = vsyncpa [#allocation3], 1
    %s1267 = scalar_lea.sflag [#allocation3], 1
    %1268 = vsyncpa %s1267, 1

</llo_original>
